<compile_context>
chip_gen: v5e
topology: v5e:2x2
jax: 0.10.0
libtpu: 0.0.40
codegen_flags: <defaults>
</compile_context>

<pallas_src>
import jax
import jax.numpy as jnp
from jax.experimental import pallas as pl
from jax.experimental.pallas import tpu as pltpu

IMAGENET_STATISTICS = {"mean": [0.485, 0.456, 0.406], "std": [0.229, 0.224, 0.225]}

DTYPE = jnp.float32            # `self.dtype` of the PyTorch module (output dtype)
COMPUTE_DTYPE = jnp.bfloat16   # MXU input dtype (f32 accumulation via preferred_element_type)


def _round_up(x: int, m: int) -> int:
    return ((x + m - 1) // m) * m


def _choose_kn_tiles(D: int, N: int):
    # K tile: as large as possible up to 2048 -> double-buffered bf16 w tiles + f32 x tiles
    # stay ~10 MiB, under the default scoped VMEM on v5e/v6e/v7x.
    tk = min(_round_up(D, 128), 2048)
    # N tile: 512 keeps both v7x TensorCores fed with independent weight streams at small B,
    # and is lane-dense (multiple of 128) for unmasked stores.
    tn = min(_round_up(N, 128), 512)
    return tk, tn


# ----------------------------------------------------------------------------
# Kernel: plain K-tiled matmul on the MXU (normalization already folded into w/b).
#   acc[tb, tn] += bf16(x[tb, tk]) @ w_bf16[tk, tn]      (f32 accumulator)
#   out = acc + b                                         on the last K step
# ----------------------------------------------------------------------------
def _linear_kernel(x_ref, w_ref, b_ref, o_ref, acc_ref):
    k = pl.program_id(2)

    @pl.when(k == 0)
    def _init():
        acc_ref[...] = jnp.zeros_like(acc_ref)

    # Cast of the activation tile happens in-register (VPU work hidden under MXU/DMA).
    acc_ref[...] += jnp.dot(
        x_ref[...].astype(COMPUTE_DTYPE),
        w_ref[...],
        preferred_element_type=jnp.float32,
    )

    @pl.when(k == pl.num_programs(2) - 1)
    def _finalize():
        o_ref[...] = (acc_ref[...] + b_ref[...]).astype(o_ref.dtype)


# ----------------------------------------------------------------------------
# ONE-TIME parameter preparation: fold ImageNet normalization into the linear layer,
# pad to tile multiples, cast weights to bf16. (Static w/b -> this never runs per forward.)
# ----------------------------------------------------------------------------
def prepare_params(w, b, *, channels: int, height: int, width: int):
    mean = jnp.asarray(IMAGENET_STATISTICS["mean"], dtype=jnp.float32)
    std = jnp.asarray(IMAGENET_STATISTICS["std"], dtype=jnp.float32)
    assert channels == mean.shape[0], "ImageNet normalization implies 3 channels"

    D, N = w.shape
    assert D == channels * height * width

    w = w.astype(jnp.float32)
    b = b.astype(jnp.float32)

    # Per-feature affine for a row-major (C, H, W) flatten: feature d -> channel d // (H*W).
    hw = height * width
    inv_std = 1.0 / std
    scale = jnp.repeat(inv_std, hw)            # (D,)
    shift = jnp.repeat(-mean * inv_std, hw)    # (D,)

    # Exact algebraic fold: (x*scale + shift) @ w + b == x @ (scale[:,None]*w) + (b + shift@w)
    w_folded = scale[:, None] * w
    b_folded = b + shift @ w

    tk, tn = _choose_kn_tiles(D, N)
    D_pad = _round_up(D, tk)
    N_pad = _round_up(N, tn)

    w_p = jnp.pad(w_folded, ((0, D_pad - D), (0, N_pad - N))).astype(COMPUTE_DTYPE)
    b_p = jnp.pad(b_folded, (0, N_pad - N)).reshape(1, N_pad).astype(jnp.float32)

    return {
        "w": w_p, "b": b_p,
        "D": D, "N": N, "D_pad": D_pad, "N_pad": N_pad,
        "tk": tk, "tn": tn,
    }


# ----------------------------------------------------------------------------
# Forward = ModelWithNormalization.forward (normalize + linear, single pallas_call)
# ----------------------------------------------------------------------------
def model_with_normalization_forward(img, prepared):
    B = img.shape[0]
    D, N = prepared["D"], prepared["N"]
    D_pad, N_pad = prepared["D_pad"], prepared["N_pad"]
    tk, tn = prepared["tk"], prepared["tn"]

    # Flatten; dtype cast (img.to(self.dtype) / bf16 for the MXU) happens inside the kernel,
    # so e.g. a uint8 image never materializes an f32 copy in HBM.
    x = img.reshape(B, -1)
    assert x.shape[1] == D

    # Batch tile: at least one f32 sublane (8), MXU-native 256 for large batches.
    tb = _round_up(B, 8) if B <= 256 else 256
    B_pad = _round_up(B, tb)

    pad_b, pad_d = B_pad - B, D_pad - D
    if pad_b or pad_d:
        x = jnp.pad(x, ((0, pad_b), (0, pad_d)))   # zero rows/cols -> exact, sliced off below

    grid = (B_pad // tb, N_pad // tn, D_pad // tk)

    out = pl.pallas_call(
        _linear_kernel,
        out_shape=jax.ShapeDtypeStruct((B_pad, N_pad), DTYPE),
        grid_spec=pltpu.PrefetchScalarGridSpec(
            num_scalar_prefetch=0,
            grid=grid,
            in_specs=[
                pl.BlockSpec((tb, tk), lambda i, j, k: (i, k)),   # x
                pl.BlockSpec((tk, tn), lambda i, j, k: (k, j)),   # w (bf16, norm-folded, padded)
                pl.BlockSpec((1, tn), lambda i, j, k: (0, j)),    # b (norm-folded, padded)
            ],
            out_specs=pl.BlockSpec((tb, tn), lambda i, j, k: (i, j)),
            scratch_shapes=[pltpu.VMEM((tb, tn), jnp.float32)],
        ),
        compiler_params=pltpu.CompilerParams(
            dimension_semantics=("parallel", "parallel", "arbitrary"),
            vmem_limit_bytes=32 * 1024 * 1024,  # safe on v5e/v6e/v7x; tiles use ~10 MiB max
        ),
    )(x, prepared["w"], prepared["b"])

    return out[:B, :N]


# ----------------------------------------------------------------------------
# Pure-JAX f32 reference for a correctness sanity check.
# ----------------------------------------------------------------------------
def _reference_forward(img, w, b):
    mean = jnp.asarray(IMAGENET_STATISTICS["mean"], dtype=jnp.float32)
    std = jnp.asarray(IMAGENET_STATISTICS["std"], dtype=jnp.float32)
    x = img.astype(DTYPE)
    xn = (x - mean[None, :, None, None]) / std[None, :, None, None]
    return xn.reshape(x.shape[0], -1) @ w + b


if __name__ == "__main__":
    B, C, H, W = 2, 3, 16, 16      # ImageNet normalization implies 3 channels
    NUM_CLASSES = 10
    D = C * H * W

    key = jax.random.PRNGKey(0)
    k_img, k_w, k_b = jax.random.split(key, 3)

    img = jax.random.uniform(k_img, (B, C, H, W), dtype=jnp.float32)   # image in [0, 1]
    w = jax.random.normal(k_w, (D, NUM_CLASSES), dtype=jnp.float32) * 0.02
    b = jax.random.normal(k_b, (NUM_CLASSES,), dtype=jnp.float32) * 0.01

    # One-time param prep (norm fold + pad + bf16 cast) -- NOT part of the per-call forward.
    prepared = prepare_params(w, b, channels=C, height=H, width=W)

    out = model_with_normalization_forward(img, prepared)
    out = jax.block_until_ready(out)

    ref = _reference_forward(img, w, b)
    assert out.shape == (B, NUM_CLASSES)
    # bf16 activations/weights with f32 accumulation: tolerance relaxed vs the pure-f32 reference.
    assert jnp.allclose(out, ref, atol=2e-2, rtol=2e-2), "mismatch vs reference"

    print("KERNEL_OK")
</pallas_src>

<mosaic_0001>
module attributes {stable_mosaic.version = 11 : i64} {
  func.func @_linear_kernel(%arg0: i32, %arg1: i32, %arg2: i32, %arg3: memref<8x768xf32, #tpu.memory_space<vmem>>, %arg4: memref<768x128xbf16, #tpu.memory_space<vmem>>, %arg5: memref<1x128xf32, #tpu.memory_space<vmem>>, %arg6: memref<8x128xf32, #tpu.memory_space<vmem>>, %arg7: memref<8x128xf32, #tpu.memory_space<vmem>>) attributes {dimension_semantics = [#tpu.dimension_semantics<parallel>, #tpu.dimension_semantics<parallel>, #tpu.dimension_semantics<arbitrary>], iteration_bounds = array<i64: 1, 1, 1>, scalar_prefetch = 0 : i64, scratch_operands = 1 : i64, tpu.core_type = #tpu.core_type<tc>, window_params = [{transform_indices = @transform_0, window_bounds = array<i64: 8, 768>}, {transform_indices = @transform_1, window_bounds = array<i64: 768, 128>}, {transform_indices = @transform_2, window_bounds = array<i64: 1, 128>}, {transform_indices = @transform_3, window_bounds = array<i64: 8, 128>}]} {
    %c0_i32 = arith.constant 0 : i32
    %0 = arith.cmpi eq, %arg2, %c0_i32 : i32
    %1 = arith.extui %0 : i1 to i32
    %c0_i32_0 = arith.constant 0 : i32
    %2 = arith.cmpi ne, %1, %c0_i32_0 : i32
    scf.if %2 {
      %cst_10 = arith.constant 0.000000e+00 : f32
      %13 = vector.broadcast %cst_10 : f32 to vector<8x128xf32>
      %c0_11 = arith.constant 0 : index
      %c0_12 = arith.constant 0 : index
      %14 = vector.load %arg7[%c0_11, %c0_12] : memref<8x128xf32, #tpu.memory_space<vmem>>, vector<8x128xf32>
      tpu.vector_store %arg7[%c0_11, %c0_12], %13 {strides = array<i32>} : memref<8x128xf32, #tpu.memory_space<vmem>>, vector<8x128xf32>,
    } else {
    }
    %c0 = arith.constant 0 : index
    %c0_1 = arith.constant 0 : index
    %3 = vector.load %arg7[%c0, %c0_1] : memref<8x128xf32, #tpu.memory_space<vmem>>, vector<8x128xf32>
    %c0_2 = arith.constant 0 : index
    %c0_3 = arith.constant 0 : index
    %4 = vector.load %arg3[%c0_2, %c0_3] : memref<8x768xf32, #tpu.memory_space<vmem>>, vector<8x768xf32>
    %5 = arith.truncf %4 : vector<8x768xf32> to vector<8x768xbf16>
    %c0_4 = arith.constant 0 : index
    %c0_5 = arith.constant 0 : index
    %6 = vector.load %arg4[%c0_4, %c0_5] : memref<768x128xbf16, #tpu.memory_space<vmem>>, vector<768x128xbf16>
    %cst = arith.constant dense<0.000000e+00> : vector<8x128xf32>
    %7 = tpu.matmul %5, %6, %cst {dimension_numbers = #tpu.dot_dimension_numbers<[1], [0], [0], [1], [0, 0, 1, 1], [], []>} : vector<8x768xbf16>, vector<768x128xbf16>, vector<8x128xf32> -> vector<8x128xf32>
    %8 = arith.addf %3, %7 : vector<8x128xf32>
    %c0_6 = arith.constant 0 : index
    %c0_7 = arith.constant 0 : index
    %9 = vector.load %arg7[%c0_6, %c0_7] : memref<8x128xf32, #tpu.memory_space<vmem>>, vector<8x128xf32>
    tpu.vector_store %arg7[%c0_6, %c0_7], %8 {strides = array<i32>} : memref<8x128xf32, #tpu.memory_space<vmem>>, vector<8x128xf32>,
    %c0_i32_8 = arith.constant 0 : i32
    %10 = arith.cmpi eq, %arg2, %c0_i32_8 : i32
    %11 = arith.extui %10 : i1 to i32
    %c0_i32_9 = arith.constant 0 : i32
    %12 = arith.cmpi ne, %11, %c0_i32_9 : i32
    scf.if %12 {
      %c0_10 = arith.constant 0 : index
      %c0_11 = arith.constant 0 : index
      %13 = vector.load %arg7[%c0_10, %c0_11] : memref<8x128xf32, #tpu.memory_space<vmem>>, vector<8x128xf32>
      %c0_12 = arith.constant 0 : index
      %c0_13 = arith.constant 0 : index
      %14 = vector.load %arg5[%c0_12, %c0_13] : memref<1x128xf32, #tpu.memory_space<vmem>>, vector<1x128xf32>
      %15 = vector.broadcast %14 : vector<1x128xf32> to vector<8x128xf32>
      %16 = arith.addf %13, %15 : vector<8x128xf32>
      %c0_14 = arith.constant 0 : index
      %c0_15 = arith.constant 0 : index
      %17 = vector.load %arg6[%c0_14, %c0_15] : memref<8x128xf32, #tpu.memory_space<vmem>>, vector<8x128xf32>
      tpu.vector_store %arg6[%c0_14, %c0_15], %16 {strides = array<i32>} : memref<8x128xf32, #tpu.memory_space<vmem>>, vector<8x128xf32>,
    } else {
    }
    return
  }
  func.func @transform_0(%arg0: i32, %arg1: i32, %arg2: i32) -> (i32, i32) {
    %c0_i32 = arith.constant 0 : i32
    return %arg0, %arg2 : i32, i32
  }
  func.func @transform_1(%arg0: i32, %arg1: i32, %arg2: i32) -> (i32, i32) {
    %c0_i32 = arith.constant 0 : i32
    return %arg2, %arg1 : i32, i32
  }
  func.func @transform_2(%arg0: i32, %arg1: i32, %arg2: i32) -> (i32, i32) {
    %c0_i32 = arith.constant 0 : i32
    %c0_i32_0 = arith.constant 0 : i32
    return %c0_i32, %arg1 : i32, i32
  }
  func.func @transform_3(%arg0: i32, %arg1: i32, %arg2: i32) -> (i32, i32) {
    %c0_i32 = arith.constant 0 : i32
    return %arg0, %arg1 : i32, i32
  }
}

</mosaic_0001>

<llo_original>
// kernel: tpu_custom_call.1
$region0: #{tpu_custom_call.1}
  #allocation0 [shape = 'u32[]', space=smem, size = 0x4, offset = 0x4, fixed_abs, tag = 'smem constant byte address 0x4 - core index']
  #allocation1 [shape = 'u32[72,128]{1,0:T(1,128)}', space=vmem, size = 0x9000, scoped, tag = 'internal scratch']
  #allocation2 [shape = 'f32[8,128]{1,0:T(8,128)}', space=vmem, size = 0x1000, scoped, tag = 'scratch operand']
  %s0 = inlined_call_operand.hbm [shape: f32[8,768], index: 0, kind: input, shape index: {}]
  %s1 = inlined_call_operand.hbm [shape: bf16[768,128], index: 1, kind: input, shape index: {}]
  %s2 = inlined_call_operand.vmem [shape: f32[1,128], index: 2, kind: input, shape index: {}]
  %s3 = inlined_call_operand.hbm [shape: f32[8,128], index: 3, kind: output, shape index: {}]
  %s4 = sld [smem:[#allocation0]]
  $region38: #{tpu_custom_call.1} parent=0
    _
  %s6 = ssub.s32 1, %s4
  %s7 = scalar_select 0, %s6, %s4
  $region1: #{tpu_custom_call.1} parent=0
    #allocation3 [shape = 'u8[24576]{0}', space=vmem, size = 0x6000, scoped, tag = 'input window, operand 0, single buffered']
    #allocation4 [shape = 's32[1]{0}', space=sflag, size = 0x4, scoped, tag = 'scoped memory for tpu_custom_call.1']
    #allocation5 [shape = 's32[1]{0}', space=sflag, size = 0x4, scoped, tag = 'scoped memory for tpu_custom_call.1']
    #allocation6 [shape = 'u8[196608]{0}', space=vmem, size = 0x30000, scoped, tag = 'input window, operand 1, single buffered']
    #allocation7 [shape = 's32[1]{0}', space=sflag, size = 0x4, scoped, tag = 'scoped memory for tpu_custom_call.1']
    #allocation8 [shape = 'u8[4096]{0}', space=vmem, size = 0x1000, scoped, tag = 'output window, operand 0, single buffered']
    %8 = vsyncpa [#allocation4], 0
    %9 = vsyncpa [#allocation7], 0
    %10 = vsyncpa [#allocation5], 0
    // Predicated region
    $region2: #{tpu_custom_call.1} parent=1 // pred_check
      _
    $region3: #{tpu_custom_call.1} parent=1 // pred_check_branch
      %12 = sbr.rel (0) target = $region5
    $region4: #{tpu_custom_call.1} parent=1 // pred_region
      %14 = vsyncadd [#allocation4], 0
      %s16 = sshll.u32 %s0, 4
      %s17 = int_to_ptr.hbm [resolvable:$true] %s16
      %s18 = sshll.u32 [#allocation3], 4
      %s19 = int_to_ptr.vmem [resolvable:$true] %s18
      %21 = dma.hbm_to_vmem [thread:$0]  %s17, 768, %s19, [#allocation4]
    $region5: #{tpu_custom_call.1} parent=1 // pred_fallthru
      _
    // Predicated region
    $region6: #{tpu_custom_call.1} parent=1 // pred_check
      _
    $region7: #{tpu_custom_call.1} parent=1 // pred_check_branch
      %23 = sbr.rel (0) target = $region9
    $region8: #{tpu_custom_call.1} parent=1 // pred_region
      %25 = vsyncadd [#allocation7], 0
      %s26 = sshll.u32 %s1, 4
      %s27 = int_to_ptr.hbm [resolvable:$true] %s26
      %s28 = sshll.u32 [#allocation6], 4
      %s29 = int_to_ptr.vmem [resolvable:$true] %s28
      %34 = dma.hbm_to_vmem [thread:$0]  %s27, 6144, %s29, [#allocation7], 64, 64, 4
    $region9: #{tpu_custom_call.1} parent=1 // pred_fallthru
      _
    // Predicated region
    $region10: #{tpu_custom_call.1} parent=1 // pred_check
      _
    $region11: #{tpu_custom_call.1} parent=1 // pred_check_branch
      %36 = sbr.rel (0) target = $region13
    $region12: #{tpu_custom_call.1} parent=1 // pred_region
      _
    $region13: #{tpu_custom_call.1} parent=1 // pred_fallthru
      _
    // Predicated region
    $region14: #{tpu_custom_call.1} parent=1 // pred_check
      _
    $region15: #{tpu_custom_call.1} parent=1 // pred_check_branch
      %38 = sbr.rel (0) target = $region17
    $region16: #{tpu_custom_call.1} parent=1 // pred_region
      %40 = dma.done [#allocation4], 768
    $region17: #{tpu_custom_call.1} parent=1 // pred_fallthru
      _
    // Predicated region
    $region18: #{tpu_custom_call.1} parent=1 // pred_check
      _
    $region19: #{tpu_custom_call.1} parent=1 // pred_check_branch
      %42 = sbr.rel (0) target = $region21
    $region20: #{tpu_custom_call.1} parent=1 // pred_region
      %44 = dma.done [#allocation7], 6144
    $region21: #{tpu_custom_call.1} parent=1 // pred_fallthru
      _
    %p45 = scmp.eq.s32.totalorder 0, 0
    // Predicated region
    $region22: #{tpu_custom_call.1} parent=1 // pred_check
      %p46 = pneg %p45
    $region23: #{tpu_custom_call.1} parent=1 // pred_check_branch
      %48 = sbr.rel (%p46) target = $region25
    $region24: #{tpu_custom_call.1} parent=1 // pred_region
      %49 = vst [vmem:[#allocation2] sm:$0xff] 0.0
    $region25: #{tpu_custom_call.1} parent=1 // pred_fallthru
      _
    %v50 = vld [vmem:[#allocation2] sm:$0xff]
    %v51 = vld [vmem:[#allocation3] sm:$0xff]
    %v52 = vld [vmem:[#allocation3 + $0x8] sm:$0xff]
    %v53 = vld [vmem:[#allocation3 + $0x10] sm:$0xff]
    %v54 = vld [vmem:[#allocation3 + $0x18] sm:$0xff]
    %v55 = vld [vmem:[#allocation3 + $0x20] sm:$0xff]
    %v56 = vld [vmem:[#allocation3 + $0x28] sm:$0xff]
    %v57 = vpack.c.bf16 %v51, %v51
    %v58 = vpack.c.bf16 %v52, %v52
    %v59 = vpack.c.bf16 %v53, %v53
    %v60 = vpack.c.bf16 %v54, %v54
    %v61 = vpack.c.bf16 %v55, %v55
    %v62 = vpack.c.bf16 %v56, %v56
    %v63 = vld [vmem:[#allocation6] sm:$0xf]
    %v64 = vld [vmem:[#allocation6 + $0x4] sm:$0xf]
    %v65 = vld [vmem:[#allocation6 + $0x8] sm:$0xf]
    %v66 = vld [vmem:[#allocation6 + $0xc] sm:$0xf]
    %v67 = vld [vmem:[#allocation6 + $0x10] sm:$0xf]
    %v68 = vld [vmem:[#allocation6 + $0x14] sm:$0xf]
    %v69 = vld [vmem:[#allocation6 + $0x18] sm:$0xf]
    %v70 = vld [vmem:[#allocation6 + $0x1c] sm:$0xf]
    %v71 = vld [vmem:[#allocation6 + $0x20] sm:$0xf]
    %v72 = vld [vmem:[#allocation6 + $0x24] sm:$0xf]
    %v73 = vld [vmem:[#allocation6 + $0x28] sm:$0xf]
    %v74 = vld [vmem:[#allocation6 + $0x2c] sm:$0xf]
    %v75 = vld [vmem:[#allocation6 + $0x30] sm:$0xf]
    %v76 = vld [vmem:[#allocation6 + $0x34] sm:$0xf]
    %v77 = vld [vmem:[#allocation6 + $0x38] sm:$0xf]
    %v78 = vld [vmem:[#allocation6 + $0x3c] sm:$0xf]
    %v79 = vld [vmem:[#allocation6 + $0x40] sm:$0xf]
    %v80 = vld [vmem:[#allocation6 + $0x44] sm:$0xf]
    %v81 = vld [vmem:[#allocation6 + $0x48] sm:$0xf]
    %v82 = vld [vmem:[#allocation6 + $0x4c] sm:$0xf]
    %v83 = vld [vmem:[#allocation6 + $0x50] sm:$0xf]
    %v84 = vld [vmem:[#allocation6 + $0x54] sm:$0xf]
    %v85 = vld [vmem:[#allocation6 + $0x58] sm:$0xf]
    %v86 = vld [vmem:[#allocation6 + $0x5c] sm:$0xf]
    %v87 = vld [vmem:[#allocation6 + $0x60] sm:$0xf]
    %v88 = vld [vmem:[#allocation6 + $0x64] sm:$0xf]
    %v89 = vld [vmem:[#allocation6 + $0x68] sm:$0xf]
    %v90 = vld [vmem:[#allocation6 + $0x6c] sm:$0xf]
    %v91 = vld [vmem:[#allocation6 + $0x70] sm:$0xf]
    %v92 = vld [vmem:[#allocation6 + $0x74] sm:$0xf]
    %v93 = vld [vmem:[#allocation6 + $0x78] sm:$0xf]
    %v94 = vld [vmem:[#allocation6 + $0x7c] sm:$0xf]
    %v95 = vld [vmem:[#allocation6 + $0x80] sm:$0xf]
    %v96 = vld [vmem:[#allocation6 + $0x84] sm:$0xf]
    %v97 = vld [vmem:[#allocation6 + $0x88] sm:$0xf]
    %v98 = vld [vmem:[#allocation6 + $0x8c] sm:$0xf]
    %v99 = vld [vmem:[#allocation6 + $0x90] sm:$0xf]
    %v100 = vld [vmem:[#allocation6 + $0x94] sm:$0xf]
    %v101 = vld [vmem:[#allocation6 + $0x98] sm:$0xf]
    %v102 = vld [vmem:[#allocation6 + $0x9c] sm:$0xf]
    %v103 = vld [vmem:[#allocation6 + $0xa0] sm:$0xf]
    %v104 = vld [vmem:[#allocation6 + $0xa4] sm:$0xf]
    %v105 = vld [vmem:[#allocation6 + $0xa8] sm:$0xf]
    %v106 = vld [vmem:[#allocation6 + $0xac] sm:$0xf]
    %v107 = vld [vmem:[#allocation6 + $0xb0] sm:$0xf]
    %v108 = vld [vmem:[#allocation6 + $0xb4] sm:$0xf]
    %v109 = vld [vmem:[#allocation6 + $0xb8] sm:$0xf]
    %v110 = vld [vmem:[#allocation6 + $0xbc] sm:$0xf]
    %v111 = vld [vmem:[#allocation6 + $0xc0] sm:$0xf]
    %v112 = vld [vmem:[#allocation6 + $0xc4] sm:$0xf]
    %v113 = vld [vmem:[#allocation6 + $0xc8] sm:$0xf]
    %v114 = vld [vmem:[#allocation6 + $0xcc] sm:$0xf]
    %v115 = vld [vmem:[#allocation6 + $0xd0] sm:$0xf]
    %v116 = vld [vmem:[#allocation6 + $0xd4] sm:$0xf]
    %v117 = vld [vmem:[#allocation6 + $0xd8] sm:$0xf]
    %v118 = vld [vmem:[#allocation6 + $0xdc] sm:$0xf]
    %v119 = vld [vmem:[#allocation6 + $0xe0] sm:$0xf]
    %v120 = vld [vmem:[#allocation6 + $0xe4] sm:$0xf]
    %v121 = vld [vmem:[#allocation6 + $0xe8] sm:$0xf]
    %v122 = vld [vmem:[#allocation6 + $0xec] sm:$0xf]
    %v123 = vld [vmem:[#allocation6 + $0xf0] sm:$0xf]
    %v124 = vld [vmem:[#allocation6 + $0xf4] sm:$0xf]
    %v125 = vld [vmem:[#allocation6 + $0xf8] sm:$0xf]
    %v126 = vld [vmem:[#allocation6 + $0xfc] sm:$0xf]
    %v127 = vld [vmem:[#allocation6 + $0x100] sm:$0xf]
    %v128 = vld [vmem:[#allocation6 + $0x104] sm:$0xf]
    %v129 = vld [vmem:[#allocation6 + $0x108] sm:$0xf]
    %v130 = vld [vmem:[#allocation6 + $0x10c] sm:$0xf]
    %v131 = vld [vmem:[#allocation6 + $0x110] sm:$0xf]
    %v132 = vld [vmem:[#allocation6 + $0x114] sm:$0xf]
    %v133 = vld [vmem:[#allocation6 + $0x118] sm:$0xf]
    %v134 = vld [vmem:[#allocation6 + $0x11c] sm:$0xf]
    %v135 = vld [vmem:[#allocation6 + $0x120] sm:$0xf]
    %v136 = vld [vmem:[#allocation6 + $0x124] sm:$0xf]
    %v137 = vld [vmem:[#allocation6 + $0x128] sm:$0xf]
    %v138 = vld [vmem:[#allocation6 + $0x12c] sm:$0xf]
    %v139 = vld [vmem:[#allocation6 + $0x130] sm:$0xf]
    %v140 = vld [vmem:[#allocation6 + $0x134] sm:$0xf]
    %v141 = vld [vmem:[#allocation6 + $0x138] sm:$0xf]
    %v142 = vld [vmem:[#allocation6 + $0x13c] sm:$0xf]
    %v143 = vld [vmem:[#allocation6 + $0x140] sm:$0xf]
    %v144 = vld [vmem:[#allocation6 + $0x144] sm:$0xf]
    %v145 = vld [vmem:[#allocation6 + $0x148] sm:$0xf]
    %v146 = vld [vmem:[#allocation6 + $0x14c] sm:$0xf]
    %v147 = vld [vmem:[#allocation6 + $0x150] sm:$0xf]
    %v148 = vld [vmem:[#allocation6 + $0x154] sm:$0xf]
    %v149 = vld [vmem:[#allocation6 + $0x158] sm:$0xf]
    %v150 = vld [vmem:[#allocation6 + $0x15c] sm:$0xf]
    %v151 = vld [vmem:[#allocation6 + $0x160] sm:$0xf]
    %v152 = vld [vmem:[#allocation6 + $0x164] sm:$0xf]
    %v153 = vld [vmem:[#allocation6 + $0x168] sm:$0xf]
    %v154 = vld [vmem:[#allocation6 + $0x16c] sm:$0xf]
    %v155 = vld [vmem:[#allocation6 + $0x170] sm:$0xf]
    %v156 = vld [vmem:[#allocation6 + $0x174] sm:$0xf]
    %v157 = vld [vmem:[#allocation6 + $0x178] sm:$0xf]
    %v158 = vld [vmem:[#allocation6 + $0x17c] sm:$0xf]
    %v255 = vunpack.c.l.b16 %v63
    %v256 = vunpack.c.l.b16 %v64
    %v257 = vunpack.c.l.b16 %v65
    %v258 = vunpack.c.l.b16 %v66
    %v259 = vunpack.c.l.b16 %v67
    %v260 = vunpack.c.l.b16 %v68
    %v261 = vunpack.c.l.b16 %v69
    %v262 = vunpack.c.l.b16 %v70
    %v263 = vunpack.c.l.b16 %v71
    %v264 = vunpack.c.l.b16 %v72
    %v265 = vunpack.c.l.b16 %v73
    %v266 = vunpack.c.l.b16 %v74
    %v267 = vunpack.c.l.b16 %v75
    %v268 = vunpack.c.l.b16 %v76
    %v269 = vunpack.c.l.b16 %v77
    %v270 = vunpack.c.l.b16 %v78
    %v271 = vunpack.c.l.b16 %v79
    %v272 = vunpack.c.l.b16 %v80
    %v273 = vunpack.c.l.b16 %v81
    %v274 = vunpack.c.l.b16 %v82
    %v275 = vunpack.c.l.b16 %v83
    %v276 = vunpack.c.l.b16 %v84
    %v277 = vunpack.c.l.b16 %v85
    %v278 = vunpack.c.l.b16 %v86
    %v279 = vunpack.c.l.b16 %v87
    %v280 = vunpack.c.l.b16 %v88
    %v281 = vunpack.c.l.b16 %v89
    %v282 = vunpack.c.l.b16 %v90
    %v283 = vunpack.c.l.b16 %v91
    %v284 = vunpack.c.l.b16 %v92
    %v285 = vunpack.c.l.b16 %v93
    %v286 = vunpack.c.l.b16 %v94
    %v287 = vunpack.c.l.b16 %v95
    %v288 = vunpack.c.l.b16 %v96
    %v289 = vunpack.c.l.b16 %v97
    %v290 = vunpack.c.l.b16 %v98
    %v291 = vunpack.c.l.b16 %v99
    %v292 = vunpack.c.l.b16 %v100
    %v293 = vunpack.c.l.b16 %v101
    %v294 = vunpack.c.l.b16 %v102
    %v295 = vunpack.c.l.b16 %v103
    %v296 = vunpack.c.l.b16 %v104
    %v297 = vunpack.c.l.b16 %v105
    %v298 = vunpack.c.l.b16 %v106
    %v299 = vunpack.c.l.b16 %v107
    %v300 = vunpack.c.l.b16 %v108
    %v301 = vunpack.c.l.b16 %v109
    %v302 = vunpack.c.l.b16 %v110
    %v303 = vunpack.c.l.b16 %v111
    %v304 = vunpack.c.l.b16 %v112
    %v305 = vunpack.c.l.b16 %v113
    %v306 = vunpack.c.l.b16 %v114
    %v307 = vunpack.c.l.b16 %v115
    %v308 = vunpack.c.l.b16 %v116
    %v309 = vunpack.c.l.b16 %v117
    %v310 = vunpack.c.l.b16 %v118
    %v311 = vunpack.c.l.b16 %v119
    %v312 = vunpack.c.l.b16 %v120
    %v313 = vunpack.c.l.b16 %v121
    %v314 = vunpack.c.l.b16 %v122
    %v315 = vunpack.c.l.b16 %v123
    %v316 = vunpack.c.l.b16 %v124
    %v317 = vunpack.c.l.b16 %v125
    %v318 = vunpack.c.l.b16 %v126
    %v319 = vunpack.c.l.b16 %v127
    %v320 = vunpack.c.l.b16 %v128
    %v321 = vunpack.c.l.b16 %v129
    %v322 = vunpack.c.l.b16 %v130
    %v323 = vunpack.c.l.b16 %v131
    %v324 = vunpack.c.l.b16 %v132
    %v325 = vunpack.c.l.b16 %v133
    %v326 = vunpack.c.l.b16 %v134
    %v327 = vunpack.c.l.b16 %v135
    %v328 = vunpack.c.l.b16 %v136
    %v329 = vunpack.c.l.b16 %v137
    %v330 = vunpack.c.l.b16 %v138
    %v331 = vunpack.c.l.b16 %v139
    %v332 = vunpack.c.l.b16 %v140
    %v333 = vunpack.c.l.b16 %v141
    %v334 = vunpack.c.l.b16 %v142
    %v335 = vunpack.c.l.b16 %v143
    %v336 = vunpack.c.l.b16 %v144
    %v337 = vunpack.c.l.b16 %v145
    %v338 = vunpack.c.l.b16 %v146
    %v339 = vunpack.c.l.b16 %v147
    %v340 = vunpack.c.l.b16 %v148
    %v341 = vunpack.c.l.b16 %v149
    %v342 = vunpack.c.l.b16 %v150
    %v343 = vunpack.c.l.b16 %v151
    %v344 = vunpack.c.l.b16 %v152
    %v345 = vunpack.c.l.b16 %v153
    %v346 = vunpack.c.l.b16 %v154
    %v347 = vunpack.c.l.b16 %v155
    %v348 = vunpack.c.l.b16 %v156
    %v349 = vunpack.c.l.b16 %v157
    %v350 = vunpack.c.l.b16 %v158
    %v351 = vpack.c.b16 %v256, %v255
    %v352 = vpack.c.b16 %v258, %v257
    %v353 = vpack.c.b16 %v260, %v259
    %v354 = vpack.c.b16 %v262, %v261
    %v355 = vpack.c.b16 %v264, %v263
    %v356 = vpack.c.b16 %v266, %v265
    %v357 = vpack.c.b16 %v268, %v267
    %v358 = vpack.c.b16 %v270, %v269
    %v359 = vpack.c.b16 %v272, %v271
    %v360 = vpack.c.b16 %v274, %v273
    %v361 = vpack.c.b16 %v276, %v275
    %v362 = vpack.c.b16 %v278, %v277
    %v363 = vpack.c.b16 %v280, %v279
    %v364 = vpack.c.b16 %v282, %v281
    %v365 = vpack.c.b16 %v284, %v283
    %v366 = vpack.c.b16 %v286, %v285
    %v367 = vpack.c.b16 %v288, %v287
    %v368 = vpack.c.b16 %v290, %v289
    %v369 = vpack.c.b16 %v292, %v291
    %v370 = vpack.c.b16 %v294, %v293
    %v371 = vpack.c.b16 %v296, %v295
    %v372 = vpack.c.b16 %v298, %v297
    %v373 = vpack.c.b16 %v300, %v299
    %v374 = vpack.c.b16 %v302, %v301
    %v375 = vpack.c.b16 %v304, %v303
    %v376 = vpack.c.b16 %v306, %v305
    %v377 = vpack.c.b16 %v308, %v307
    %v378 = vpack.c.b16 %v310, %v309
    %v379 = vpack.c.b16 %v312, %v311
    %v380 = vpack.c.b16 %v314, %v313
    %v381 = vpack.c.b16 %v316, %v315
    %v382 = vpack.c.b16 %v318, %v317
    %v383 = vpack.c.b16 %v320, %v319
    %v384 = vpack.c.b16 %v322, %v321
    %v385 = vpack.c.b16 %v324, %v323
    %v386 = vpack.c.b16 %v326, %v325
    %v387 = vpack.c.b16 %v328, %v327
    %v388 = vpack.c.b16 %v330, %v329
    %v389 = vpack.c.b16 %v332, %v331
    %v390 = vpack.c.b16 %v334, %v333
    %v391 = vpack.c.b16 %v336, %v335
    %v392 = vpack.c.b16 %v338, %v337
    %v393 = vpack.c.b16 %v340, %v339
    %v394 = vpack.c.b16 %v342, %v341
    %v395 = vpack.c.b16 %v344, %v343
    %v396 = vpack.c.b16 %v346, %v345
    %v397 = vpack.c.b16 %v348, %v347
    %v398 = vpack.c.b16 %v350, %v349
    %447 = vmatpush.bf16.msra.mxu0 %v358
    %448 = vmatpush.bf16.msra.mxu0 %v357
    %449 = vmatpush.bf16.msra.mxu0 %v356
    %450 = vmatpush.bf16.msra.mxu0 %v355
    %451 = vmatpush.bf16.msra.mxu0 %v354
    %452 = vmatpush.bf16.msra.mxu0 %v353
    %453 = vmatpush.bf16.msra.mxu0 %v352
    %454 = vmatpush.bf16.msra.mxu0 %v351
    %455 = vmatmul.bf16.gmra.mxu0 %v57
    %v456 = vpop.f32.mrf.mxu0
    %v457 = vadd.f32 0.0, %v456
    %v458 = vpop.f32.mrf.mxu0
    %459 = vdwg.mxu0
    %460 = vmatpush.bf16.msra.mxu0 %v366
    %461 = vmatpush.bf16.msra.mxu0 %v365
    %462 = vmatpush.bf16.msra.mxu0 %v364
    %463 = vmatpush.bf16.msra.mxu0 %v363
    %464 = vmatpush.bf16.msra.mxu0 %v362
    %465 = vmatpush.bf16.msra.mxu0 %v361
    %466 = vmatpush.bf16.msra.mxu0 %v360
    %467 = vmatpush.bf16.msra.mxu0 %v359
    %468 = vmatmul.bf16.gmra.mxu0 %v58
    %v469 = vpop.f32.mrf.mxu0
    %v470 = vadd.f32 %v457, %v469
    %v471 = vpop.f32.mrf.mxu0
    %472 = vdwg.mxu0
    %473 = vmatpush.bf16.msra.mxu0 %v374
    %474 = vmatpush.bf16.msra.mxu0 %v373
    %475 = vmatpush.bf16.msra.mxu0 %v372
    %476 = vmatpush.bf16.msra.mxu0 %v371
    %477 = vmatpush.bf16.msra.mxu0 %v370
    %478 = vmatpush.bf16.msra.mxu0 %v369
    %479 = vmatpush.bf16.msra.mxu0 %v368
    %480 = vmatpush.bf16.msra.mxu0 %v367
    %481 = vmatmul.bf16.gmra.mxu0 %v59
    %v482 = vpop.f32.mrf.mxu0
    %v483 = vadd.f32 %v470, %v482
    %v484 = vpop.f32.mrf.mxu0
    %485 = vdwg.mxu0
    %486 = vmatpush.bf16.msra.mxu0 %v382
    %487 = vmatpush.bf16.msra.mxu0 %v381
    %488 = vmatpush.bf16.msra.mxu0 %v380
    %489 = vmatpush.bf16.msra.mxu0 %v379
    %490 = vmatpush.bf16.msra.mxu0 %v378
    %491 = vmatpush.bf16.msra.mxu0 %v377
    %492 = vmatpush.bf16.msra.mxu0 %v376
    %493 = vmatpush.bf16.msra.mxu0 %v375
    %494 = vmatmul.bf16.gmra.mxu0 %v60
    %v495 = vpop.f32.mrf.mxu0
    %v496 = vadd.f32 %v483, %v495
    %v497 = vpop.f32.mrf.mxu0
    %498 = vdwg.mxu0
    %499 = vmatpush.bf16.msra.mxu0 %v390
    %500 = vmatpush.bf16.msra.mxu0 %v389
    %501 = vmatpush.bf16.msra.mxu0 %v388
    %502 = vmatpush.bf16.msra.mxu0 %v387
    %503 = vmatpush.bf16.msra.mxu0 %v386
    %504 = vmatpush.bf16.msra.mxu0 %v385
    %505 = vmatpush.bf16.msra.mxu0 %v384
    %506 = vmatpush.bf16.msra.mxu0 %v383
    %507 = vmatmul.bf16.gmra.mxu0 %v61
    %v508 = vpop.f32.mrf.mxu0
    %v509 = vadd.f32 %v496, %v508
    %v510 = vpop.f32.mrf.mxu0
    %511 = vdwg.mxu0
    %512 = vmatpush.bf16.msra.mxu0 %v398
    %513 = vmatpush.bf16.msra.mxu0 %v397
    %514 = vmatpush.bf16.msra.mxu0 %v396
    %515 = vmatpush.bf16.msra.mxu0 %v395
    %516 = vmatpush.bf16.msra.mxu0 %v394
    %517 = vmatpush.bf16.msra.mxu0 %v393
    %518 = vmatpush.bf16.msra.mxu0 %v392
    %519 = vmatpush.bf16.msra.mxu0 %v391
    %520 = vmatmul.bf16.gmra.mxu0 %v62
    %v521 = vpop.f32.mrf.mxu0
    %v522 = vadd.f32 %v509, %v521
    %v523 = vpop.f32.mrf.mxu0
    %524 = vdwg.mxu0
    %v525 = vadd.f32 %v50, %v522
    %526 = vst [vmem:[#allocation2] sm:$0xff] %v525
    // Predicated region
    $region26: #{tpu_custom_call.1} parent=1 // pred_check
      %p527 = pneg %p45
    $region27: #{tpu_custom_call.1} parent=1 // pred_check_branch
      %529 = sbr.rel (%p527) target = $region29
    $region28: #{tpu_custom_call.1} parent=1 // pred_region
      %v530 = vld [vmem:[#allocation2] sm:$0xff]
      %v531 = vld [vmem:[%s2] sm:$0x1]
      %v533 = vperm.slane %v531, 0
      %v535 = vadd.f32 %v530, %v533
      %536 = vst [vmem:[#allocation8] sm:$0xff] %v535
    $region29: #{tpu_custom_call.1} parent=1 // pred_fallthru
      _
    // Predicated region
    $region30: #{tpu_custom_call.1} parent=1 // pred_check
      _
    $region31: #{tpu_custom_call.1} parent=1 // pred_check_branch
      %538 = sbr.rel (0) target = $region33
    $region32: #{tpu_custom_call.1} parent=1 // pred_region
      %540 = vsyncadd [#allocation5], 0
      %s542 = sshll.u32 [#allocation8], 4
      %s543 = int_to_ptr.vmem [resolvable:$true] %s542
      %s544 = sshll.u32 %s3, 4
      %s545 = int_to_ptr.hbm [resolvable:$true] %s544
      %547 = dma.vmem_to_hbm [thread:$0]  %s543, 128, %s545, [#allocation5]
    $region33: #{tpu_custom_call.1} parent=1 // pred_fallthru
      _
    // Predicated region
    $region34: #{tpu_custom_call.1} parent=1 // pred_check
      _
    $region35: #{tpu_custom_call.1} parent=1 // pred_check_branch
      %549 = sbr.rel (0) target = $region37
    $region36: #{tpu_custom_call.1} parent=1 // pred_region
      %551 = dma.done [#allocation5], 128
    $region37: #{tpu_custom_call.1} parent=1 // pred_fallthru
      _
    %552 = vsyncpa [#allocation4], 1
    %553 = vsyncpa [#allocation7], 1
    %554 = vsyncpa [#allocation5], 1

</llo_original>
